<compile_context>
chip_gen: v5e
topology: v5e:2x2
jax: 0.10.0
libtpu: 0.0.40
codegen_flags: <defaults>
</compile_context>

<pallas_src>
import functools

import jax
import jax.numpy as jnp
from jax.experimental import pallas as pl
from jax.experimental.pallas import tpu as pltpu


def _round_up(x, m):
    return ((x + m - 1) // m) * m


def _vmem_cap_bytes():
    """Usable VMEM budget: physical VMEM with ~25% headroom for compiler scratch."""
    phys = 64 << 20  # conservative fallback (v7x per-TC VMEM)
    try:
        info = pltpu.get_tpu_info()
        p = getattr(info, "vmem_capacity_bytes", None)
        if p:
            phys = int(p)
    except Exception:
        pass
    return (phys * 3) // 4


# ----------------------------------------------------------------------------
# Projector kernel: (tm, H) x (H, tn) MXU matmul + f32 bias, lane-dense stores
# ----------------------------------------------------------------------------
def _projector_kernel(x_ref, w_ref, b_ref, o_ref):
    # x_ref : (tm, H)  original activation dtype (cast to bf16 here, not in HBM)
    # w_ref : (H, tn)  compute dtype (bf16), pre-cast/padded at init
    # b_ref : (1, tn)  f32, pre-cast/padded at init
    # o_ref : (tm, tn) output dtype
    x = x_ref[...].astype(w_ref.dtype)                 # VPU cast hides under MXU
    acc = jnp.dot(x, w_ref[...], preferred_element_type=jnp.float32)
    o_ref[...] = (acc + b_ref[...]).astype(o_ref.dtype)


# ----------------------------------------------------------------------------
# One-time parameter packing (weight cast/pad happens here, NOT per forward)
# ----------------------------------------------------------------------------
def _choose_tn(O_lane, H, tn_cap, cb, vmem_cap):
    # v6e/v7x MXU is 256x256: prefer 256-wide N tiles when they divide cleanly.
    gran = 256 if (O_lane % 256 == 0) else 128
    tn_cap = max(gran, min(_round_up(tn_cap, gran), O_lane))
    # Keep the double-buffered weight tile within ~1/3 of the VMEM budget.
    while tn_cap > gran and 2 * H * tn_cap * cb > vmem_cap // 3:
        tn_cap -= gran
    gn = pl.cdiv(O_lane, tn_cap)
    tn_eff = _round_up(pl.cdiv(O_lane, gn), gran)       # balanced tiles
    return tn_eff, gn * tn_eff


def prepare_projector_params(weight, bias, *, tn=512, compute_dtype=jnp.bfloat16):
    """Cast + lane-pad the projector parameters once (amortized over all calls)."""
    H, O = weight.shape
    cb = jnp.dtype(compute_dtype).itemsize
    O_lane = _round_up(O, 128)
    tn_eff, O_pad = _choose_tn(O_lane, H, tn, cb, _vmem_cap_bytes())

    w = weight.astype(compute_dtype)
    b = bias.reshape(1, O).astype(jnp.float32)
    if O_pad != O:
        w = jnp.pad(w, ((0, 0), (0, O_pad - O)))
        b = jnp.pad(b, ((0, 0), (0, O_pad - O)))
    return {"w": w, "b": b, "out_dim": O, "tn": tn_eff}


# ----------------------------------------------------------------------------
# Projector forward (hot path)
# ----------------------------------------------------------------------------
def projector_forward(x, length, *, params, tm=512, out_dtype=None):
    """Linear projection over the last (hidden) dim.

    x : (B, T, H); params from prepare_projector_params.
    returns (y, length) with y : (B, T, O)
    """
    B, T, H = x.shape
    w, b = params["w"], params["b"]
    O, tn_eff = params["out_dim"], params["tn"]
    O_pad = w.shape[1]
    O_lane = _round_up(O, 128)
    # NOTE: out_dtype defaults to x.dtype; pass bf16 explicitly on v5e for
    # vocab-sized heads to halve writeback traffic if downstream allows.
    out_dtype = x.dtype if out_dtype is None else out_dtype

    M = B * T
    xb = jnp.dtype(x.dtype).itemsize
    cb = jnp.dtype(w.dtype).itemsize
    ob = jnp.dtype(out_dtype).itemsize
    cap = _vmem_cap_bytes()

    def footprint(tm_):
        # double-buffered tiles: x (orig dtype), weight (bf16), bias (f32), out
        return (2 * tm_ * H * xb + 2 * H * tn_eff * cb
                + 2 * tn_eff * 4 + 2 * tm_ * tn_eff * ob)

    tm_eff = min(_round_up(tm, 8), _round_up(M, 8))
    # Grow the row tile when VMEM allows (v5e/v6e: up to 1024 → fewer weight
    # re-streams); shrink it when it does not (large H on v7x's 64 MiB).
    tm_hi = min(1024, _round_up(M, 8))
    while tm_eff * 2 <= tm_hi and footprint(tm_eff * 2) <= cap // 2:
        tm_eff *= 2
    while tm_eff > 8 and footprint(tm_eff) > cap:
        tm_eff = max(8, _round_up(tm_eff // 2, 8))
    # TODO(synk): if H is so large that even tm=8 overflows the budget, add a K
    # grid axis ("arbitrary") with an f32 VMEM accumulator instead of spilling.

    gm = pl.cdiv(M, tm_eff)
    gn = O_pad // tn_eff

    x2 = x.reshape(M, H)  # contiguous reshape: no extra HBM copy, no cast

    # Grid ordering by residency: the inner axis' operand is re-streamed once
    # per outer step; keep the expensive one stationary.
    w_restream = gm * H * O_pad * cb
    x_restream = gn * M * H * xb
    if w_restream <= x_restream:
        grid = (gm, gn)                    # rows outer: x tile stationary
        x_map = lambda i, j: (i, 0)
        w_map = lambda i, j: (0, j)
        b_map = lambda i, j: (0, j)
        o_map = lambda i, j: (i, j)
        bytes_accessed = M * H * xb + w_restream + O_pad * 4 + M * O_lane * ob
    else:
        grid = (gn, gm)                    # cols outer: weight tile stationary
        x_map = lambda j, i: (i, 0)
        w_map = lambda j, i: (0, j)
        b_map = lambda j, i: (0, j)
        o_map = lambda j, i: (i, j)
        bytes_accessed = x_restream + H * O_pad * cb + O_pad * 4 + M * O_lane * ob

    vmem_limit = int(min(max(footprint(tm_eff) + (4 << 20), 8 << 20), cap))

    # TODO(synk): if a trace shows exposed weight DMA in the decode case
    # (gm == 1), add pipeline_mode=pl.Buffered(3) to the weight BlockSpec.
    y2 = pl.pallas_call(
        _projector_kernel,
        out_shape=jax.ShapeDtypeStruct((M, O_lane), out_dtype),
        grid_spec=pl.GridSpec(
            grid=grid,
            in_specs=[
                pl.BlockSpec((tm_eff, H), x_map),    # activation row tile
                pl.BlockSpec((H, tn_eff), w_map),    # weight N tile (pre-packed)
                pl.BlockSpec((1, tn_eff), b_map),    # bias N tile (f32)
            ],
            out_specs=pl.BlockSpec((tm_eff, tn_eff), o_map),
        ),
        compiler_params=pltpu.CompilerParams(
            dimension_semantics=("parallel", "parallel"),
            vmem_limit_bytes=vmem_limit,
        ),
        cost_estimate=pl.CostEstimate(
            flops=2 * M * H * O_pad,
            transcendentals=0,
            bytes_accessed=int(bytes_accessed),
        ),
    )(x2, w, b)

    y = y2 if O_lane == O else y2[:, :O]
    return y.reshape(B, T, O), length


# ----------------------------------------------------------------------------
# Identity decoder (pure passthrough — no compute hot path)
# ----------------------------------------------------------------------------
def identity_forward(x, length):
    return x, length


# ----------------------------------------------------------------------------
# Decoder dispatcher (mirrors the PyTorch Decoder.__init__/forward)
# ----------------------------------------------------------------------------
class Decoder:
    def __init__(self, config, *, key=None):
        self.model = config["model"]
        if self.model == "Identity":
            self._fwd = identity_forward
        elif self.model == "Projector":
            cfg = config["config"]
            H, O = cfg["input_dim"], cfg["output_dim"]
            if key is None:
                key = jax.random.PRNGKey(0)
            kw, kb = jax.random.split(key)
            # deterministic synthetic init (nn.Linear-like uniform fan-in scaling)
            bound = float(1.0 / (H ** 0.5))
            self.weight = jax.random.uniform(kw, (H, O), jnp.float32, -bound, bound)
            self.bias = jax.random.uniform(kb, (O,), jnp.float32, -bound, bound)
            # One-time weight/bias cast + lane padding (hot path never recasts).
            self._params = prepare_projector_params(self.weight, self.bias)
            self._fwd = functools.partial(projector_forward, params=self._params)
        else:
            raise ValueError(f"unknown decoder model: {self.model}")

    def forward(self, x, length):
        return self._fwd(x, length)

    def streaming_forward(self, x, length, **cfg):
        # TODO(synk): neither Identity nor Projector define a dedicated
        # streaming_forward in the reference; mirror the PyTorch dispatcher
        # and raise, matching `Decoder.streaming_forward` semantics.
        raise NotImplementedError(
            f"{self.model} decoder does not support streaming_forward"
        )

    __call__ = forward


# ----------------------------------------------------------------------------
# Demo / smoke test
# ----------------------------------------------------------------------------
if __name__ == "__main__":
    key = jax.random.PRNGKey(0)
    kx, kp, kx2 = jax.random.split(key, 3)

    B, T, H, O = 2, 8, 32, 16
    x = jax.random.normal(kx, (B, T, H), dtype=jnp.float32)
    length = jnp.full((B,), T, dtype=jnp.int32)

    # Projector decoder (the compute path)
    dec = Decoder(
        {"model": "Projector", "config": {"input_dim": H, "output_dim": O}},
        key=kp,
    )
    y, out_len = dec(x, length)
    y = jax.block_until_ready(y)

    # reference check in plain JAX (bf16 compute in kernel → relaxed tolerance)
    y_ref = (x.reshape(B * T, H) @ dec.weight + dec.bias).reshape(B, T, O)
    assert y.shape == (B, T, O)
    assert jnp.allclose(y, y_ref, atol=2e-2, rtol=2e-2)
    assert jnp.array_equal(out_len, length)

    # Tail path: B*T not a multiple of 8 → partial row block masked by Pallas.
    T2 = 9
    x2 = jax.random.normal(kx2, (B, T2, H), dtype=jnp.float32)
    length2 = jnp.full((B,), T2, dtype=jnp.int32)
    y2, out_len2 = dec(x2, length2)
    y2 = jax.block_until_ready(y2)
    y2_ref = (x2.reshape(B * T2, H) @ dec.weight + dec.bias).reshape(B, T2, O)
    assert y2.shape == (B, T2, O)
    assert jnp.allclose(y2, y2_ref, atol=2e-2, rtol=2e-2)
    assert jnp.array_equal(out_len2, length2)

    # Identity decoder (passthrough path)
    dec_id = Decoder({"model": "Identity", "config": {}})
    xi, li = dec_id(x, length)
    assert jnp.array_equal(xi, x) and jnp.array_equal(li, length)

    print("KERNEL_OK")
</pallas_src>

<mosaic_0001>
module attributes {stable_mosaic.version = 11 : i64} {
  func.func @_projector_kernel(%arg0: i32, %arg1: i32, %arg2: memref<16x32xf32, #tpu.memory_space<vmem>>, %arg3: memref<32x128xbf16, #tpu.memory_space<vmem>>, %arg4: memref<1x128xf32, #tpu.memory_space<vmem>>, %arg5: memref<16x128xf32, #tpu.memory_space<vmem>>) attributes {dimension_semantics = [#tpu.dimension_semantics<parallel>, #tpu.dimension_semantics<parallel>], iteration_bounds = array<i64: 1, 1>, scalar_prefetch = 0 : i64, scratch_operands = 0 : i64, tpu.core_type = #tpu.core_type<tc>, window_params = [{transform_indices = @transform_0, window_bounds = array<i64: 16, 32>}, {transform_indices = @transform_1, window_bounds = array<i64: 32, 128>}, {transform_indices = @transform_2, window_bounds = array<i64: 1, 128>}, {transform_indices = @transform_3, window_bounds = array<i64: 16, 128>}]} {
    %c0 = arith.constant 0 : index
    %c0_0 = arith.constant 0 : index
    %0 = vector.load %arg2[%c0, %c0_0] : memref<16x32xf32, #tpu.memory_space<vmem>>, vector<16x32xf32>
    %1 = arith.truncf %0 : vector<16x32xf32> to vector<16x32xbf16>
    %c0_1 = arith.constant 0 : index
    %c0_2 = arith.constant 0 : index
    %2 = vector.load %arg3[%c0_1, %c0_2] : memref<32x128xbf16, #tpu.memory_space<vmem>>, vector<32x128xbf16>
    %cst = arith.constant dense<0.000000e+00> : vector<16x128xf32>
    %3 = tpu.matmul %1, %2, %cst {dimension_numbers = #tpu.dot_dimension_numbers<[1], [0], [0], [1], [0, 0, 1, 1], [], []>} : vector<16x32xbf16>, vector<32x128xbf16>, vector<16x128xf32> -> vector<16x128xf32>
    %c0_3 = arith.constant 0 : index
    %c0_4 = arith.constant 0 : index
    %4 = vector.load %arg4[%c0_3, %c0_4] : memref<1x128xf32, #tpu.memory_space<vmem>>, vector<1x128xf32>
    %5 = vector.broadcast %4 : vector<1x128xf32> to vector<16x128xf32>
    %6 = arith.addf %3, %5 : vector<16x128xf32>
    %c0_5 = arith.constant 0 : index
    %c0_6 = arith.constant 0 : index
    %7 = vector.load %arg5[%c0_5, %c0_6] : memref<16x128xf32, #tpu.memory_space<vmem>>, vector<16x128xf32>
    tpu.vector_store %arg5[%c0_5, %c0_6], %6 {strides = array<i32>} : memref<16x128xf32, #tpu.memory_space<vmem>>, vector<16x128xf32>,
    return
  }
  func.func @transform_0(%arg0: i32, %arg1: i32) -> (i32, i32) {
    %c0_i32 = arith.constant 0 : i32
    %c0_i32_0 = arith.constant 0 : i32
    return %arg1, %c0_i32 : i32, i32
  }
  func.func @transform_1(%arg0: i32, %arg1: i32) -> (i32, i32) {
    %c0_i32 = arith.constant 0 : i32
    %c0_i32_0 = arith.constant 0 : i32
    return %c0_i32, %arg0 : i32, i32
  }
  func.func @transform_2(%arg0: i32, %arg1: i32) -> (i32, i32) {
    %c0_i32 = arith.constant 0 : i32
    %c0_i32_0 = arith.constant 0 : i32
    return %c0_i32, %arg0 : i32, i32
  }
  func.func @transform_3(%arg0: i32, %arg1: i32) -> (i32, i32) {
    %c0_i32 = arith.constant 0 : i32
    return %arg1, %arg0 : i32, i32
  }
}

</mosaic_0001>

<llo_original>
// kernel: tpu_custom_call.1
$region0: #{tpu_custom_call.1}
  #allocation0 [shape = 'u32[]', space=smem, size = 0x4, offset = 0x4, fixed_abs, tag = 'smem constant byte address 0x4 - core index']
  #allocation1 [shape = 'u32[72,128]{1,0:T(1,128)}', space=vmem, size = 0x9000, scoped, tag = 'internal scratch']
  %s0 = inlined_call_operand.hbm [shape: f32[16,32], index: 0, kind: input, shape index: {}]
  %s1 = inlined_call_operand.hbm [shape: bf16[32,128], index: 1, kind: input, shape index: {}]
  %s2 = inlined_call_operand.vmem [shape: f32[1,128], index: 2, kind: input, shape index: {}]
  %s3 = inlined_call_operand.hbm [shape: f32[16,128], index: 3, kind: output, shape index: {}]
  %s4 = sld [smem:[#allocation0]]
  $region30: #{tpu_custom_call.1} parent=0
    _
  %s6 = ssub.s32 1, %s4
  %s7 = scalar_select 0, %s6, %s4
  $region1: #{tpu_custom_call.1} parent=0
    #allocation2 [shape = 'u8[8192]{0}', space=vmem, size = 0x2000, scoped, tag = 'input window, operand 0, single buffered']
    #allocation3 [shape = 's32[1]{0}', space=sflag, size = 0x4, scoped, tag = 'scoped memory for tpu_custom_call.1']
    #allocation4 [shape = 's32[1]{0}', space=sflag, size = 0x4, scoped, tag = 'scoped memory for tpu_custom_call.1']
    #allocation5 [shape = 'u8[8192]{0}', space=vmem, size = 0x2000, scoped, tag = 'input window, operand 1, single buffered']
    #allocation6 [shape = 's32[1]{0}', space=sflag, size = 0x4, scoped, tag = 'scoped memory for tpu_custom_call.1']
    #allocation7 [shape = 'u8[8192]{0}', space=vmem, size = 0x2000, scoped, tag = 'output window, operand 0, single buffered']
    %8 = vsyncpa [#allocation3], 0
    %9 = vsyncpa [#allocation6], 0
    %10 = vsyncpa [#allocation4], 0
    // Predicated region
    $region2: #{tpu_custom_call.1} parent=1 // pred_check
      _
    $region3: #{tpu_custom_call.1} parent=1 // pred_check_branch
      %12 = sbr.rel (0) target = $region5
    $region4: #{tpu_custom_call.1} parent=1 // pred_region
      %14 = vsyncadd [#allocation3], 0
      %s15 = sshll.u32 %s0, 4
      %s16 = int_to_ptr.hbm [resolvable:$true] %s15
      %s17 = sshll.u32 [#allocation2], 4
      %s18 = int_to_ptr.vmem [resolvable:$true] %s17
      %23 = dma.hbm_to_vmem [thread:$0]  %s16, 256, %s18, [#allocation3], 128, 128, 8
    $region5: #{tpu_custom_call.1} parent=1 // pred_fallthru
      _
    // Predicated region
    $region6: #{tpu_custom_call.1} parent=1 // pred_check
      _
    $region7: #{tpu_custom_call.1} parent=1 // pred_check_branch
      %25 = sbr.rel (0) target = $region9
    $region8: #{tpu_custom_call.1} parent=1 // pred_region
      %27 = vsyncadd [#allocation6], 0
      %s28 = sshll.u32 %s1, 4
      %s29 = int_to_ptr.hbm [resolvable:$true] %s28
      %s30 = sshll.u32 [#allocation5], 4
      %s31 = int_to_ptr.vmem [resolvable:$true] %s30
      %36 = dma.hbm_to_vmem [thread:$0]  %s29, 256, %s31, [#allocation6], 64, 64, 4
    $region9: #{tpu_custom_call.1} parent=1 // pred_fallthru
      _
    // Predicated region
    $region10: #{tpu_custom_call.1} parent=1 // pred_check
      _
    $region11: #{tpu_custom_call.1} parent=1 // pred_check_branch
      %38 = sbr.rel (0) target = $region13
    $region12: #{tpu_custom_call.1} parent=1 // pred_region
      _
    $region13: #{tpu_custom_call.1} parent=1 // pred_fallthru
      _
    // Predicated region
    $region14: #{tpu_custom_call.1} parent=1 // pred_check
      _
    $region15: #{tpu_custom_call.1} parent=1 // pred_check_branch
      %40 = sbr.rel (0) target = $region17
    $region16: #{tpu_custom_call.1} parent=1 // pred_region
      %42 = dma.done [#allocation3], 256
    $region17: #{tpu_custom_call.1} parent=1 // pred_fallthru
      _
    // Predicated region
    $region18: #{tpu_custom_call.1} parent=1 // pred_check
      _
    $region19: #{tpu_custom_call.1} parent=1 // pred_check_branch
      %44 = sbr.rel (0) target = $region21
    $region20: #{tpu_custom_call.1} parent=1 // pred_region
      %46 = dma.done [#allocation6], 256
    $region21: #{tpu_custom_call.1} parent=1 // pred_fallthru
      _
    %v48 = vld [vmem:[#allocation2] sm:$0xff]
    %v49 = vld [vmem:[#allocation2 + $0x8] sm:$0xff]
    %v50 = vpack.c.bf16 %v49, %v48
    %v51 = vld [vmem:[#allocation5] sm:$0xf]
    %v52 = vld [vmem:[#allocation5 + $0x4] sm:$0xf]
    %v53 = vld [vmem:[#allocation5 + $0x8] sm:$0xf]
    %v54 = vld [vmem:[#allocation5 + $0xc] sm:$0xf]
    %v55 = vld [vmem:[%s2] sm:$0x1]
    %v57 = vperm.slane %v55, 0
    %v63 = vunpack.c.l.b16 %v51
    %v64 = vunpack.c.l.b16 %v52
    %v65 = vunpack.c.l.b16 %v53
    %v66 = vunpack.c.l.b16 %v54
    %v67 = vpack.c.b16 %v64, %v63
    %v68 = vpack.c.b16 %v66, %v65
    %vm71 = vcmask 261120
    %v73 = vsel %vm71, %v50, 0
    %75 = vmatpush.bf16.msra.mxu0 0
    %76 = vmatpush.bf16.msra.mxu0 0
    %77 = vmatpush.bf16.msra.mxu0 0
    %78 = vmatpush.bf16.msra.mxu0 0
    %79 = vmatpush.bf16.msra.mxu0 0
    %80 = vmatpush.bf16.msra.mxu0 0
    %81 = vmatpush.bf16.msra.mxu0 %v68
    %82 = vmatpush.bf16.msra.mxu0 %v67
    %83 = vmatmul.bf16.gmra.mxu0 %v73
    %v84 = vpop.f32.mrf.mxu0
    %v85 = vadd.f32 %v57, %v84
    %v86 = vpop.f32.mrf.mxu0
    %v87 = vadd.f32 %v57, %v86
    %88 = vdwg.mxu0
    %89 = vst [vmem:[#allocation7] sm:$0xff] %v85
    %90 = vst [vmem:[#allocation7 + $0x8] sm:$0xff] %v87
    // Predicated region
    $region22: #{tpu_custom_call.1} parent=1 // pred_check
      _
    $region23: #{tpu_custom_call.1} parent=1 // pred_check_branch
      %92 = sbr.rel (0) target = $region25
    $region24: #{tpu_custom_call.1} parent=1 // pred_region
      %94 = vsyncadd [#allocation4], 0
      %s95 = sshll.u32 [#allocation7], 4
      %s96 = int_to_ptr.vmem [resolvable:$true] %s95
      %s97 = sshll.u32 %s3, 4
      %s98 = int_to_ptr.hbm [resolvable:$true] %s97
      %103 = dma.vmem_to_hbm [thread:$0]  %s96, 256, %s98, [#allocation4], 128, 128, 8
    $region25: #{tpu_custom_call.1} parent=1 // pred_fallthru
      _
    // Predicated region
    $region26: #{tpu_custom_call.1} parent=1 // pred_check
      _
    $region27: #{tpu_custom_call.1} parent=1 // pred_check_branch
      %105 = sbr.rel (0) target = $region29
    $region28: #{tpu_custom_call.1} parent=1 // pred_region
      %107 = dma.done [#allocation4], 256
    $region29: #{tpu_custom_call.1} parent=1 // pred_fallthru
      _
    %108 = vsyncpa [#allocation3], 1
    %109 = vsyncpa [#allocation6], 1
    %110 = vsyncpa [#allocation4], 1

</llo_original>
